<compile_context>
chip_gen: v6e
topology: v6e:2x2x1
jax: 0.10.0
libtpu: 0.0.40
codegen_flags: <defaults>
</compile_context>

<pallas_src>
import math

import jax
import jax.numpy as jnp
from jax.experimental import pallas as pl
from jax.experimental.pallas import tpu as pltpu


# --------------------------------- kernel ----------------------------------------


def _gcn_kernel(adj_ref, presup_ref, own_ref, b_ref, out_ref):
    """One (tm, F) output row block.

    adj_ref   : (tm, N)  bf16   row block of the adjacency (no +I, not normalized)
    presup_ref: (N,  F)  bf16   resident pre_sup = x @ W (MXU operand)
    own_ref   : (tm, F)  f32    this block's own rows of pre_sup  (== I @ pre_sup)
    b_ref     : (1,  F)  f32    bias row
    out_ref   : (tm, F)  f32
    """
    adj_blk = adj_ref[...]                                           # (tm, N) bf16

    # Neighbour aggregation straight from bf16 on the MXU, f32 accumulation.
    agg = jnp.dot(adj_blk, presup_ref[...],
                  preferred_element_type=jnp.float32)                # (tm, F) f32

    # adj_hat = adj + I  =>  the identity contribution is just this block's rows.
    agg = agg + own_ref[...]

    # Row normalization moved to the (tm, F) output: degree = rowsum(adj) + 1
    # (the +1 is the identity's diagonal).  f32 accumulation for the degree.
    deg = jnp.sum(adj_blk.astype(jnp.float32), axis=1, keepdims=True) + 1.0   # (tm, 1)
    out = agg * pl.reciprocal(deg, approx=True) + b_ref[...]         # EUP recip, VPU mul

    out_ref[...] = jnp.tanh(out).astype(out_ref.dtype)               # EUP tanh


# --------------------------------- wrapper ---------------------------------------


def _round_up(v, m):
    return (v + m - 1) // m * m


def _vmem_bytes(tm, n, f, adj_bytes=2):
    """Double-buffered working-set estimate for one grid step."""
    return (2 * tm * n * adj_bytes   # adj row blocks (streamed, 2 buffers)
            + 2 * n * f * 2          # resident bf16 pre_sup (2 buffers by default)
            + 2 * tm * f * 4         # pre_sup own-row block (f32 identity term)
            + 2 * tm * f * 4         # output block (f32)
            + 2 * f * 4)             # bias row


def graph_convolution(x, adj, W, b, *, tm=512):
    """Fused GraphConvolution forward.  x:(N,F)  adj:(N,N)  W:(F,F)  b:(F,)."""
    N, F = x.shape
    assert adj.shape == (N, N) and W.shape == (F, F)

    # pre_sup = x @ W hoisted out of the grid (review: lets the row axis be "parallel"
    # for v7x megacore and removes the step-0 pipeline imbalance).
    pre_sup = jnp.dot(x.astype(jnp.float32), W.astype(jnp.float32))   # (N, F) f32
    pre_sup_bf16 = pre_sup.astype(jnp.bfloat16)                       # MXU operand
    adj_bf16 = jnp.asarray(adj, jnp.bfloat16)                         # halve the HBM stream
    b2 = jnp.asarray(b, jnp.float32).reshape(1, F)

    # ---- VMEM-aware row-tile selection (never falls back to tm = N) ----
    try:
        vmem_cap = int(pltpu.get_tpu_info().vmem_capacity_bytes)
    except Exception:
        vmem_cap = 64 * 1024 * 1024            # conservative: v7x per-core VMEM
    vmem_budget = int(0.8 * vmem_cap)          # headroom for compiler scratch / sems

    tm = min(_round_up(int(tm), 8), _round_up(N, 8))
    while tm > 8 and _vmem_bytes(tm, N, F) > vmem_budget // 2:
        tm = max(8, _round_up(tm // 2, 8))

    # Pad the row dimension (only) so the grid is exact; padded rows are discarded.
    Np = pl.cdiv(N, tm) * tm
    if Np != N:
        adj_bf16 = jnp.pad(adj_bf16, ((0, Np - N), (0, 0)))
        own = jnp.pad(pre_sup, ((0, Np - N), (0, 0)))
    else:
        own = pre_sup
    grid = (Np // tm,)

    vmem_limit = int(min(max(2 * _vmem_bytes(tm, N, F), 16 * 1024 * 1024), vmem_budget))

    out = pl.pallas_call(
        _gcn_kernel,
        out_shape=jax.ShapeDtypeStruct((Np, F), jnp.float32),
        grid=grid,
        in_specs=[
            pl.BlockSpec((tm, N), lambda i: (i, 0)),   # adj: streamed bf16 row blocks
            pl.BlockSpec((N, F), lambda i: (0, 0)),    # pre_sup (bf16): resident
            pl.BlockSpec((tm, F), lambda i: (i, 0)),   # pre_sup own rows (f32): I-term
            pl.BlockSpec((1, F), lambda i: (0, 0)),    # bias row
        ],
        out_specs=pl.BlockSpec((tm, F), lambda i: (i, 0)),
        compiler_params=pltpu.CompilerParams(
            dimension_semantics=("parallel",),         # no cross-step carry any more
            vmem_limit_bytes=vmem_limit,
        ),
    )(adj_bf16, pre_sup_bf16, own, b2)

    return out[:N] if Np != N else out


# ---------------- deterministic param init (mimics Truncated_initializer) ---------


def truncated_initializer(key, shape):
    k1, k2 = jax.random.split(key)
    u1 = jax.random.uniform(k1, shape) * (1.0 - math.exp(-2.0)) + math.exp(-2.0)
    u2 = jax.random.uniform(k2, shape)
    z = jnp.sqrt(-2.0 * jnp.log(u1)) * jnp.cos(2.0 * math.pi * u2)
    return z.astype(jnp.float32)


def gcn_reference(x, adj, W, b):
    """Pure-JAX reference of the PyTorch forward (eval mode)."""
    N = adj.shape[0]
    adj_hat = adj + jnp.eye(N, dtype=adj.dtype)
    adj_norm = adj_hat / jnp.sum(adj_hat, axis=1, keepdims=True)
    return jnp.tanh(adj_norm @ (x @ W) + b)


if __name__ == "__main__":
    key = jax.random.PRNGKey(0)
    hidden_dim = 32

    # (N=16, tm=8): multi-block grid.  (N=20, tm=8): exercises row padding (Np=24).
    for N, tile in ((16, 8), (20, 8)):
        kx, ka, kw = jax.random.split(jax.random.fold_in(key, N), 3)
        x = jax.random.normal(kx, (N, hidden_dim), dtype=jnp.float32)
        adj = (jax.random.uniform(ka, (N, N)) > 0.5).astype(jnp.float32)
        W = truncated_initializer(kw, (hidden_dim, hidden_dim))
        b = jnp.zeros((hidden_dim,), dtype=jnp.float32)   # module inits bias to zeros

        out = jax.block_until_ready(graph_convolution(x, adj, W, b, tm=tile))
        expected = gcn_reference(x, adj, W, b)
        assert out.shape == (N, hidden_dim)
        assert bool(jnp.allclose(out, expected, rtol=2e-2, atol=2e-2)), \
            f"Pallas GraphConvolution does not match reference (N={N})"

    print("KERNEL_OK")
</pallas_src>

<mosaic_0001>
module attributes {stable_mosaic.version = 11 : i64} {
  func.func @_gcn_kernel(%arg0: i32, %arg1: memref<8x16xbf16, #tpu.memory_space<vmem>>, %arg2: memref<16x32xbf16, #tpu.memory_space<vmem>>, %arg3: memref<8x32xf32, #tpu.memory_space<vmem>>, %arg4: memref<1x32xf32, #tpu.memory_space<vmem>>, %arg5: memref<8x32xf32, #tpu.memory_space<vmem>>) attributes {dimension_semantics = [#tpu.dimension_semantics<parallel>], iteration_bounds = array<i64: 2>, scalar_prefetch = 0 : i64, scratch_operands = 0 : i64, tpu.core_type = #tpu.core_type<tc>, window_params = [{transform_indices = @transform_0, window_bounds = array<i64: 8, 16>}, {pipeline_mode = #tpu.pipeline_mode<synchronous>, transform_indices = @transform_1, window_bounds = array<i64: 16, 32>}, {transform_indices = @transform_2, window_bounds = array<i64: 8, 32>}, {pipeline_mode = #tpu.pipeline_mode<synchronous>, transform_indices = @transform_3, window_bounds = array<i64: 1, 32>}, {transform_indices = @transform_4, window_bounds = array<i64: 8, 32>}]} {
    %c0 = arith.constant 0 : index
    %c0_0 = arith.constant 0 : index
    %0 = vector.load %arg1[%c0, %c0_0] : memref<8x16xbf16, #tpu.memory_space<vmem>>, vector<8x16xbf16>
    %c0_1 = arith.constant 0 : index
    %c0_2 = arith.constant 0 : index
    %1 = vector.load %arg2[%c0_1, %c0_2] : memref<16x32xbf16, #tpu.memory_space<vmem>>, vector<16x32xbf16>
    %cst = arith.constant dense<0.000000e+00> : vector<8x32xf32>
    %2 = tpu.matmul %0, %1, %cst {dimension_numbers = #tpu.dot_dimension_numbers<[1], [0], [0], [1], [0, 0, 1, 1], [], []>} : vector<8x16xbf16>, vector<16x32xbf16>, vector<8x32xf32> -> vector<8x32xf32>
    %c0_3 = arith.constant 0 : index
    %c0_4 = arith.constant 0 : index
    %3 = vector.load %arg3[%c0_3, %c0_4] : memref<8x32xf32, #tpu.memory_space<vmem>>, vector<8x32xf32>
    %4 = arith.addf %2, %3 : vector<8x32xf32>
    %5 = arith.extf %0 : vector<8x16xbf16> to vector<8x16xf32>
    %cst_5 = arith.constant dense<0.000000e+00> : vector<8xf32>
    %6 = vector.multi_reduction <add>, %5, %cst_5 [1] : vector<8x16xf32> to vector<8xf32>
    %7 = vector.shape_cast %6 : vector<8xf32> to vector<8x1xf32>
    %cst_6 = arith.constant 1.000000e+00 : f32
    %8 = vector.broadcast %cst_6 : f32 to vector<8x1xf32>
    %9 = arith.addf %7, %8 : vector<8x1xf32>
    %10 = tpu.reciprocal %9 {approx = true} : vector<8x1xf32> -> vector<8x1xf32>
    %11 = vector.broadcast %10 : vector<8x1xf32> to vector<8x32xf32>
    %12 = arith.mulf %4, %11 : vector<8x32xf32>
    %c0_7 = arith.constant 0 : index
    %c0_8 = arith.constant 0 : index
    %13 = vector.load %arg4[%c0_7, %c0_8] : memref<1x32xf32, #tpu.memory_space<vmem>>, vector<1x32xf32>
    %14 = vector.broadcast %13 : vector<1x32xf32> to vector<8x32xf32>
    %15 = arith.addf %12, %14 : vector<8x32xf32>
    %16 = math.tanh %15 : vector<8x32xf32>
    %c0_9 = arith.constant 0 : index
    %c0_10 = arith.constant 0 : index
    %17 = vector.load %arg5[%c0_9, %c0_10] : memref<8x32xf32, #tpu.memory_space<vmem>>, vector<8x32xf32>
    tpu.vector_store %arg5[%c0_9, %c0_10], %16 {strides = array<i32>} : memref<8x32xf32, #tpu.memory_space<vmem>>, vector<8x32xf32>,
    return
  }
  func.func @transform_0(%arg0: i32) -> (i32, i32) {
    %c0_i32 = arith.constant 0 : i32
    %c0_i32_0 = arith.constant 0 : i32
    return %arg0, %c0_i32 : i32, i32
  }
  func.func @transform_1(%arg0: i32) -> (i32, i32) {
    %c0_i32 = arith.constant 0 : i32
    %c0_i32_0 = arith.constant 0 : i32
    %c0_i32_1 = arith.constant 0 : i32
    return %c0_i32, %c0_i32_0 : i32, i32
  }
  func.func @transform_2(%arg0: i32) -> (i32, i32) {
    %c0_i32 = arith.constant 0 : i32
    %c0_i32_0 = arith.constant 0 : i32
    return %arg0, %c0_i32 : i32, i32
  }
  func.func @transform_3(%arg0: i32) -> (i32, i32) {
    %c0_i32 = arith.constant 0 : i32
    %c0_i32_0 = arith.constant 0 : i32
    %c0_i32_1 = arith.constant 0 : i32
    return %c0_i32, %c0_i32_0 : i32, i32
  }
  func.func @transform_4(%arg0: i32) -> (i32, i32) {
    %c0_i32 = arith.constant 0 : i32
    %c0_i32_0 = arith.constant 0 : i32
    return %arg0, %c0_i32 : i32, i32
  }
}

</mosaic_0001>

<llo_original>
// kernel: tpu_custom_call.1
$region0: #{tpu_custom_call.1}
  #allocation0 [shape = 'u32[]', space=smem, size = 0x4, offset = 0x4, fixed_abs, tag = 'smem constant byte address 0x4 - core index']
  #allocation1 [shape = 'u32[144,128]{1,0:T(1,128)}', space=vmem, size = 0x12000, scoped, tag = 'internal scratch']
  %s0 = inlined_call_operand.hbm [shape: bf16[16,16], index: 0, kind: input, shape index: {}]
  %s1 = inlined_call_operand.hbm [shape: bf16[16,32], index: 1, kind: input, shape index: {}]
  %s2 = inlined_call_operand.hbm [shape: f32[16,32], index: 2, kind: input, shape index: {}]
  %s3 = inlined_call_operand.vmem [shape: f32[1,32], index: 3, kind: input, shape index: {}]
  %s4 = inlined_call_operand.hbm [shape: f32[16,32], index: 4, kind: output, shape index: {}]
  %s5 = sld [smem:[#allocation0]]
  $region61: #{tpu_custom_call.1} parent=0
    _
  %s7 = ssub.s32 1, %s5
  %s8 = scalar_select 0, %s7, %s5
  $region1: #{tpu_custom_call.1} parent=0
    #allocation2 [shape = 'u8[4096]{0}', space=vmem, size = 0x1000, scoped, tag = 'input window, operand 0']
    #allocation3 [shape = 's32[2]{0}', space=sflag, size = 0x8, scoped, tag = 'scoped memory for tpu_custom_call.1']
    #allocation4 [shape = 's32[2]{0}', space=sflag, size = 0x8, scoped, tag = 'scoped memory for tpu_custom_call.1']
    #allocation5 [shape = 'u8[4096]{0}', space=vmem, size = 0x1000, scoped, tag = 'input window, operand 1, single buffered']
    #allocation6 [shape = 's32[1]{0}', space=sflag, size = 0x4, scoped, tag = 'scoped memory for tpu_custom_call.1']
    #allocation7 [shape = 'u8[8192]{0}', space=vmem, size = 0x2000, scoped, tag = 'input window, operand 2']
    #allocation8 [shape = 'u8[8192]{0}', space=vmem, size = 0x2000, scoped, tag = 'output window, operand 0']
    %9 = vsyncpa [#allocation3], 0
    %s10 = scalar_lea.sflag [#allocation3], 1
    %11 = vsyncpa %s10, 0
    %12 = vsyncpa [#allocation6], 0
    %13 = vsyncpa [#allocation4], 0
    %s14 = scalar_lea.sflag [#allocation4], 1
    %15 = vsyncpa %s14, 0
    loop: start=0, step=1, limit=4
    $region2: #{tpu_custom_call.1} parent=1 // loop_pre_header
      _
    $region3: #{tpu_custom_call.1} parent=1 // loop_header
      %s17 = sphi 0, %s21
      %p18 = scmp.ge.s32.totalorder %s17, 4
      %s27 = sphi 0, %s29
      %s30 = sphi 0, %s27
      %s31 = sphi 0, %s30
      %s47 = sphi 0, %s31
      %s51 = sphi 0, %s51
      %s53 = sphi 0, %s51
      %s54 = sphi 0, %s53
      %s68 = sphi 0, %s54
      %s74 = sphi 0, %s76
      %s77 = sphi 0, %s74
      %s78 = sphi 0, %s77
      %s94 = sphi 0, %s78
      %s98 = sphi 0, %s98
      %s100 = sphi 0, %s98
      %s101 = sphi 0, %s100
      %s115 = sphi 0, %s101
      %s121 = sphi 0, %s123
      %s124 = sphi 0, %s121
      %s125 = sphi 0, %s124
      %s141 = sphi 0, %s125
    $region4: #{tpu_custom_call.1} parent=1 // loop_header_branch
      %20 = sbr.rel (%p18) target = $region8
    $region5: #{tpu_custom_call.1} parent=1 // loop_body
      %s22 = ssub.s32 %s17, 1
      %s23 = ssub.s32 %s17, 2
      %s24 = sadd.s32 %s17, 1
      %s25 = ssub.s32 %s17, %s24
      %p26 = scmp.eq.s32.totalorder %s25, 0
      %s28 = sadd.s32 %s27, 1
      %s29 = scalar_select %p26, %s27, %s28
      %p32 = pneg %p26
      %p33 = scmp.eq.s32.totalorder %s17, 1
      %p34 = por %p32, %p33
      %p35 = scmp.ne.s32.totalorder %s27, %s30
      %p36 = scmp.eq.s32.totalorder %s17, 0
      %p37 = por %p35, %p36
      %p38 = scmp.ne.s32.totalorder %s27, %s30
      %p39 = scmp.eq.s32.totalorder %s22, 1
      %p40 = por %p38, %p39
      %p41 = scmp.ne.s32.totalorder %s30, %s31
      %p42 = scmp.eq.s32.totalorder %s22, 0
      %p43 = por %p41, %p42
      %p44 = scmp.ne.s32.totalorder %s30, %s31
      %p45 = scmp.eq.s32.totalorder %s23, 1
      %p46 = por %p44, %p45
      %p48 = scmp.ne.s32.totalorder %s31, %s47
      %p49 = scmp.eq.s32.totalorder %s23, 0
      %p50 = por %p48, %p49
      %s52 = sadd.s32 %s51, 1
      %p55 = scmp.eq.s32.totalorder %s17, 1
      %p56 = scmp.ne.s32.totalorder %s51, %s53
      %p57 = scmp.eq.s32.totalorder %s17, 0
      %p58 = por %p56, %p57
      %p59 = scmp.ne.s32.totalorder %s51, %s53
      %p60 = scmp.eq.s32.totalorder %s22, 1
      %p61 = por %p59, %p60
      %p62 = scmp.ne.s32.totalorder %s53, %s54
      %p63 = scmp.eq.s32.totalorder %s22, 0
      %p64 = por %p62, %p63
      %p65 = scmp.ne.s32.totalorder %s53, %s54
      %p66 = scmp.eq.s32.totalorder %s23, 1
      %p67 = por %p65, %p66
      %p69 = scmp.ne.s32.totalorder %s54, %s68
      %p70 = scmp.eq.s32.totalorder %s23, 0
      %p71 = por %p69, %p70
      %s72 = ssub.s32 %s17, %s24
      %p73 = scmp.eq.s32.totalorder %s72, 0
      %s75 = sadd.s32 %s74, 1
      %s76 = scalar_select %p73, %s74, %s75
      %p79 = pneg %p73
      %p80 = scmp.eq.s32.totalorder %s17, 1
      %p81 = por %p79, %p80
      %p82 = scmp.ne.s32.totalorder %s74, %s77
      %p83 = scmp.eq.s32.totalorder %s17, 0
      %p84 = por %p82, %p83
      %p85 = scmp.ne.s32.totalorder %s74, %s77
      %p86 = scmp.eq.s32.totalorder %s22, 1
      %p87 = por %p85, %p86
      %p88 = scmp.ne.s32.totalorder %s77, %s78
      %p89 = scmp.eq.s32.totalorder %s22, 0
      %p90 = por %p88, %p89
      %p91 = scmp.ne.s32.totalorder %s77, %s78
      %p92 = scmp.eq.s32.totalorder %s23, 1
      %p93 = por %p91, %p92
      %p95 = scmp.ne.s32.totalorder %s78, %s94
      %p96 = scmp.eq.s32.totalorder %s23, 0
      %p97 = por %p95, %p96
      %s99 = sadd.s32 %s98, 1
      %p102 = scmp.eq.s32.totalorder %s17, 1
      %p103 = scmp.ne.s32.totalorder %s98, %s100
      %p104 = scmp.eq.s32.totalorder %s17, 0
      %p105 = por %p103, %p104
      %p106 = scmp.ne.s32.totalorder %s98, %s100
      %p107 = scmp.eq.s32.totalorder %s22, 1
      %p108 = por %p106, %p107
      %p109 = scmp.ne.s32.totalorder %s100, %s101
      %p110 = scmp.eq.s32.totalorder %s22, 0
      %p111 = por %p109, %p110
      %p112 = scmp.ne.s32.totalorder %s100, %s101
      %p113 = scmp.eq.s32.totalorder %s23, 1
      %p114 = por %p112, %p113
      %p116 = scmp.ne.s32.totalorder %s101, %s115
      %p117 = scmp.eq.s32.totalorder %s23, 0
      %p118 = por %p116, %p117
      %s119 = ssub.s32 %s17, %s24
      %p120 = scmp.eq.s32.totalorder %s119, 0
      %s122 = sadd.s32 %s121, 1
      %s123 = scalar_select %p120, %s121, %s122
      %p126 = pneg %p120
      %p127 = scmp.eq.s32.totalorder %s17, 1
      %p128 = por %p126, %p127
      %p129 = scmp.ne.s32.totalorder %s121, %s124
      %p130 = scmp.eq.s32.totalorder %s17, 0
      %p131 = por %p129, %p130
      %p132 = scmp.ne.s32.totalorder %s121, %s124
      %p133 = scmp.eq.s32.totalorder %s22, 1
      %p134 = por %p132, %p133
      %p135 = scmp.ne.s32.totalorder %s124, %s125
      %p136 = scmp.eq.s32.totalorder %s22, 0
      %p137 = por %p135, %p136
      %p138 = scmp.ne.s32.totalorder %s124, %s125
      %p139 = scmp.eq.s32.totalorder %s23, 1
      %p140 = por %p138, %p139
      %p142 = scmp.ne.s32.totalorder %s125, %s141
      %p143 = scmp.eq.s32.totalorder %s23, 0
      %p144 = por %p142, %p143
      %p145 = scmp.le.s32.totalorder 1, %s17
      %p146 = scmp.lt.s32.totalorder %s17, 3
      %p147 = pnand %p145, %p146
      %p148 = pneg %p147
      // Predicated region
      $region9: #{tpu_custom_call.1} parent=5 // pred_check
        _
      $region10: #{tpu_custom_call.1} parent=5 // pred_check_branch
        %150 = sbr.rel (%p147) target = $region12
      $region11: #{tpu_custom_call.1} parent=5 // pred_region
        %s151 = ssub.s32 %s17, 1
        // Predicated region
        $region13: #{tpu_custom_call.1} parent=11 // pred_check
          %p152 = pneg %p64
        $region14: #{tpu_custom_call.1} parent=11 // pred_check_branch
          %154 = sbr.rel (%p152) target = $region16
        $region15: #{tpu_custom_call.1} parent=11 // pred_region
          %s156 = ssub.s32 128, 128
          %157 = vsyncadd [#allocation6], %s156
          %s158 = sshll.u32 [#allocation5], 4
          %s159 = int_to_ptr.vmem [resolvable:$true] %s158
          %164 = dma.hbm_to_vmem [thread:$0]  %s1, 128, %s159, [#allocation6], 64, 64, 4
        $region16: #{tpu_custom_call.1} parent=11 // pred_fallthru
          _
        // Predicated region
        $region17: #{tpu_custom_call.1} parent=11 // pred_check
          %p165 = pneg %p111
        $region18: #{tpu_custom_call.1} parent=11 // pred_check_branch
          %167 = sbr.rel (%p165) target = $region20
        $region19: #{tpu_custom_call.1} parent=11 // pred_region
          _
        $region20: #{tpu_custom_call.1} parent=11 // pred_fallthru
          _
      $region12: #{tpu_custom_call.1} parent=5 // pred_fallthru
        _
      %p168 = scmp.lt.s32.totalorder %s17, 2
      // Predicated region
      $region21: #{tpu_custom_call.1} parent=5 // pred_check
        %p169 = pneg %p168
      $region22: #{tpu_custom_call.1} parent=5 // pred_check_branch
        %171 = sbr.rel (%p169) target = $region24
      $region23: #{tpu_custom_call.1} parent=5 // pred_region
        // Predicated region
        $region25: #{tpu_custom_call.1} parent=23 // pred_check
          %p172 = pneg %p37
        $region26: #{tpu_custom_call.1} parent=23 // pred_check_branch
          %174 = sbr.rel (%p172) target = $region28
        $region27: #{tpu_custom_call.1} parent=23 // pred_region
          %s175 = sand.u32 %s17, 1
          %s176 = scalar_lea.sflag [#allocation3], %s175
          %s177 = sand.u32 %s27, 1
          %s178 = smul.addr %s177, 4
          %s179 = scalar_lea.vmem [#allocation2], %s178
          %s181 = ssub.s32 64, 64
          %182 = vsyncadd %s176, %s181
          %s183 = smul.addr %s17, 64
          %s184 = scalar_lea.hbm %s0, %s183
          %s186 = sshll.u32 %s179, 4
          %s187 = int_to_ptr.vmem [resolvable:$true] %s186
          %189 = dma.hbm_to_vmem [thread:$0]  %s184, 64, %s187, %s176
        $region28: #{tpu_custom_call.1} parent=23 // pred_fallthru
          _
        // Predicated region
        $region29: #{tpu_custom_call.1} parent=23 // pred_check
          %p190 = pneg %p84
        $region30: #{tpu_custom_call.1} parent=23 // pred_check_branch
          %192 = sbr.rel (%p190) target = $region32
        $region31: #{tpu_custom_call.1} parent=23 // pred_region
          %s193 = sand.u32 %s17, 1
          %s194 = scalar_lea.sflag [#allocation3], %s193
          %s195 = sand.u32 %s74, 1
          %s196 = smul.addr %s195, 8
          %s197 = scalar_lea.vmem [#allocation7], %s196
          %s199 = ssub.s32 128, 128
          %200 = vsyncadd %s194, %s199
          %s201 = smul.addr %s17, 128
          %s202 = scalar_lea.hbm %s2, %s201
          %s204 = sshll.u32 %s197, 4
          %s205 = int_to_ptr.vmem [resolvable:$true] %s204
          %207 = dma.hbm_to_vmem [thread:$0]  %s202, 128, %s205, %s194
        $region32: #{tpu_custom_call.1} parent=23 // pred_fallthru
          _
      $region24: #{tpu_custom_call.1} parent=5 // pred_fallthru
        _
      %p208 = scmp.le.s32.totalorder 1, %s17
      %p209 = scmp.lt.s32.totalorder %s17, 3
      %p210 = pnand %p208, %p209
      %p211 = pneg %p210
      // Predicated region
      $region33: #{tpu_custom_call.1} parent=5 // pred_check
        _
      $region34: #{tpu_custom_call.1} parent=5 // pred_check_branch
        %213 = sbr.rel (%p210) target = $region36
      $region35: #{tpu_custom_call.1} parent=5 // pred_region
        %s214 = ssub.s32 %s17, 1
        %s215 = sand.u32 %s22, 1
        %s216 = scalar_lea.sflag [#allocation3], %s215
        %s217 = sand.u32 %s30, 1
        %s218 = smul.addr %s217, 4
        %s219 = scalar_lea.vmem [#allocation2], %s218
        // Predicated region
        $region37: #{tpu_custom_call.1} parent=35 // pred_check
          %p220 = pneg %p43
        $region38: #{tpu_custom_call.1} parent=35 // pred_check_branch
          %222 = sbr.rel (%p220) target = $region40
        $region39: #{tpu_custom_call.1} parent=35 // pred_region
          %223 = dma.done %s216, 64
        $region40: #{tpu_custom_call.1} parent=35 // pred_fallthru
          _
        // Predicated region
        $region41: #{tpu_custom_call.1} parent=35 // pred_check
          %p224 = pneg %p64
        $region42: #{tpu_custom_call.1} parent=35 // pred_check_branch
          %226 = sbr.rel (%p224) target = $region44
        $region43: #{tpu_custom_call.1} parent=35 // pred_region
          %227 = dma.done [#allocation6], 128
        $region44: #{tpu_custom_call.1} parent=35 // pred_fallthru
          _
        %s228 = sand.u32 %s22, 1
        %s229 = scalar_lea.sflag [#allocation3], %s228
        %s230 = sand.u32 %s77, 1
        %s231 = smul.addr %s230, 8
        %s232 = scalar_lea.vmem [#allocation7], %s231
        // Predicated region
        $region45: #{tpu_custom_call.1} parent=35 // pred_check
          %p233 = pneg %p90
        $region46: #{tpu_custom_call.1} parent=35 // pred_check_branch
          %235 = sbr.rel (%p233) target = $region48
        $region47: #{tpu_custom_call.1} parent=35 // pred_region
          %236 = dma.done %s229, 128
        $region48: #{tpu_custom_call.1} parent=35 // pred_fallthru
          _
        %s237 = sand.u32 %s22, 1
        %s238 = scalar_lea.sflag [#allocation3], %s237
        %s239 = sand.u32 %s30, 1
        %s240 = smul.addr %s239, 4
        %s241 = scalar_lea.vmem [#allocation2], %s240
        %p242 = pneg %p43
        %p243 = pneg %p40
        %p244 = pneg %p64
        %p245 = pneg %p61
        %s246 = sand.u32 %s22, 1
        %s247 = scalar_lea.sflag [#allocation3], %s246
        %s248 = sand.u32 %s77, 1
        %s249 = smul.addr %s248, 8
        %s250 = scalar_lea.vmem [#allocation7], %s249
        %p251 = pneg %p90
        %p252 = pneg %p87
        %p253 = pneg %p111
        %p254 = pneg %p108
        %p255 = pneg %p137
        %p256 = pneg %p134
        %s257 = sand.u32 %s124, 1
        %s258 = scalar_lea.sflag [#allocation4], %s257
        %s259 = sand.u32 %s124, 1
        %s260 = smul.addr %s259, 8
        %s261 = scalar_lea.vmem [#allocation8], %s260
        %v263 = vld [vmem:[%s219] sm:$0xf]
        %v264 = vld [vmem:[#allocation5] sm:$0xf]
        %v265 = vld [vmem:[#allocation5 + $0x4] sm:$0xf]
        %v266 = vld [vmem:[%s232] sm:$0xff]
        %v269 = vunpack.c.l.b16 %v264
        %v270 = vunpack.c.l.b16 %v265
        %v271 = vpack.c.b16 %v270, %v269
        %vm273 = vcmask 130048
        %v275 = vsel %vm273, %v263, 0
        %277 = vmatprep.subr.bf16.mxu0 0
        %278 = vmatpush1.bf16.msra.mxu0 0
        %279 = vmatprep.subr.bf16.mxu0 0
        %280 = vmatpush1.bf16.msra.mxu0 0
        %281 = vmatprep.subr.bf16.mxu0 0
        %282 = vmatpush1.bf16.msra.mxu0 0
        %283 = vmatprep.subr.bf16.mxu0 0
        %284 = vmatpush1.bf16.msra.mxu0 0
        %285 = vmatprep.subr.bf16.mxu0 0
        %286 = vmatpush1.bf16.msra.mxu0 0
        %287 = vmatprep.subr.bf16.mxu0 0
        %288 = vmatpush1.bf16.msra.mxu0 0
        %289 = vmatprep.subr.bf16.mxu0 0
        %290 = vmatpush1.bf16.msra.mxu0 0
        %291 = vmatprep.subr.bf16.mxu0 0
        %292 = vmatpush1.bf16.msra.mxu0 %v271
        %293 = vmatprep.subr.bf16.mxu0 0
        %294 = vmatpush2.bf16.msra.mxu0 0
        %295 = vmatprep.subr.bf16.mxu0 0
        %296 = vmatpush2.bf16.msra.mxu0 0
        %297 = vmatprep.subr.bf16.mxu0 0
        %298 = vmatpush2.bf16.msra.mxu0 0
        %299 = vmatprep.subr.bf16.mxu0 0
        %300 = vmatpush2.bf16.msra.mxu0 0
        %301 = vmatprep.subr.bf16.mxu0 0
        %302 = vmatpush2.bf16.msra.mxu0 0
        %303 = vmatprep.subr.bf16.mxu0 0
        %304 = vmatpush2.bf16.msra.mxu0 0
        %305 = vmatprep.subr.bf16.mxu0 0
        %306 = vmatpush2.bf16.msra.mxu0 0
        %307 = vmatprep.subr.bf16.mxu0 0
        %308 = vmatpush2.bf16.msra.mxu0 0
        %309 = vmatprep.mubr.bf16.mxu0 0
        %310 = vmatmul.mubr.bf16.gmra.mxu0 %v275
        %v311 = vpop.f32.mrf.mxu0
        %v312 = vadd.f32 %v266, %v311
        %v313 = vpop.f32.mrf.mxu0
        %v314 = vpop.f32.mrf.mxu0
        %v315 = vpop.f32.mrf.mxu0
        %316 = vdwg.mxu0
        %v317 = vunpack.c.l.bf16 %v263
        %v318 = vsel %vm273, %v317, 0.0
        %319 = vadd.xlane.f32.xlu0 %v318
        %v320 = vpop.xlane.xlu0 %319
        %v321 = vadd.f32 %v320, 1.0
        %v322 = vrcp.pop %v321
        %v323 = vmul.f32 %v312, %v322
        %v324 = vld [vmem:[%s3] sm:$0x1]
        %v326 = vlaneseq
        %v327 = vshrl.u32 %v326, 7
        %v328 = vsub.s32 0, %v327
        %v329 = vrot.slane %v324, %v328
        %v331 = vadd.f32 %v323, %v329
        %v332 = vtanh.pop %v331
        %vm333 = vcmask 261120
        %334 = vst.msk [vmem:[%s261] sm:$0xff] %vm333, %v332
        %s335 = sand.u32 %s124, 1
        %s336 = scalar_lea.sflag [#allocation4], %s335
        %s337 = sand.u32 %s124, 1
        %s338 = smul.addr %s337, 8
        %s339 = scalar_lea.vmem [#allocation8], %s338
        // Predicated region
        $region49: #{tpu_custom_call.1} parent=35 // pred_check
          %p340 = pneg %p134
        $region50: #{tpu_custom_call.1} parent=35 // pred_check_branch
          %342 = sbr.rel (%p340) target = $region52
        $region51: #{tpu_custom_call.1} parent=35 // pred_region
          %s344 = ssub.s32 128, 128
          %345 = vsyncadd %s336, %s344
          %s346 = smul.addr %s22, 128
          %s347 = scalar_lea.hbm %s4, %s346
          %s349 = sshll.u32 %s339, 4
          %s350 = int_to_ptr.vmem [resolvable:$true] %s349
          %352 = dma.vmem_to_hbm [thread:$0]  %s350, 128, %s347, %s336
        $region52: #{tpu_custom_call.1} parent=35 // pred_fallthru
          _
      $region36: #{tpu_custom_call.1} parent=5 // pred_fallthru
        _
      %p353 = scmp.le.s32.totalorder 2, %s17
      // Predicated region
      $region53: #{tpu_custom_call.1} parent=5 // pred_check
        %p354 = pneg %p353
      $region54: #{tpu_custom_call.1} parent=5 // pred_check_branch
        %356 = sbr.rel (%p354) target = $region56
      $region55: #{tpu_custom_call.1} parent=5 // pred_region
        %s357 = ssub.s32 %s17, 2
        // Predicated region
        $region57: #{tpu_custom_call.1} parent=55 // pred_check
          %p358 = pneg %p140
        $region58: #{tpu_custom_call.1} parent=55 // pred_check_branch
          %360 = sbr.rel (%p358) target = $region60
        $region59: #{tpu_custom_call.1} parent=55 // pred_region
          %s361 = sand.u32 %s125, 1
          %s362 = scalar_lea.sflag [#allocation4], %s361
          %s363 = sand.u32 %s125, 1
          %s364 = smul.addr %s363, 8
          %s365 = scalar_lea.vmem [#allocation8], %s364
          %366 = dma.done %s362, 128
        $region60: #{tpu_custom_call.1} parent=55 // pred_fallthru
          _
      $region56: #{tpu_custom_call.1} parent=5 // pred_fallthru
        _
    $region6: #{tpu_custom_call.1} parent=1 // loop_footer
      %s21 = sadd.s32 1, %s17
    $region7: #{tpu_custom_call.1} parent=1 // loop_footer_branch
      %16 = sbr.rel target = $region3
    $region8: #{tpu_custom_call.1} parent=1 // loop_exit
      _
    %367 = vsyncpa [#allocation3], 1
    %s368 = scalar_lea.sflag [#allocation3], 1
    %369 = vsyncpa %s368, 1
    %370 = vsyncpa [#allocation6], 1
    %371 = vsyncpa [#allocation4], 1
    %s372 = scalar_lea.sflag [#allocation4], 1
    %373 = vsyncpa %s372, 1

</llo_original>
